<compile_context>
chip_gen: v5e
topology: v5e:2x2
jax: 0.10.0
libtpu: 0.0.40
codegen_flags: <defaults>
</compile_context>

<pallas_src>
import functools

import jax
import jax.numpy as jnp
from jax.experimental import pallas as pl
from jax.experimental.pallas import tpu as pltpu


# ----------------------------------------------------------------------------
# VMEM budgeting
# ----------------------------------------------------------------------------
def _vmem_capacity_bytes():
    try:
        return int(pltpu.get_tpu_info().vmem_capacity_bytes)
    except Exception:
        return 64 * 1024 * 1024  # conservative (v7x per-TC physical VMEM)


_VMEM_CAP = _vmem_capacity_bytes()
# Scoped VMEM limit requested from Mosaic (leave headroom for internal scratch).
_VMEM_LIMIT_BYTES = min(int(_VMEM_CAP * 0.85), 100 * 1024 * 1024)
# Budget used by the tile pickers (double-buffered blocks + scratch + temps).
_TILE_VMEM_BUDGET = int(_VMEM_CAP * 0.45)


def _compiler_params(semantics):
    return pltpu.CompilerParams(dimension_semantics=semantics,
                                vmem_limit_bytes=int(_VMEM_LIMIT_BYTES))


def _tile_candidates(n, cap, mult):
    """Divisors of n that are <= cap and multiples of `mult`, descending.
    Falls back to the full dimension (always a legal block shape)."""
    cands = [t for t in range(min(cap, n), 0, -1) if n % t == 0 and t % mult == 0]
    if not cands:
        cands = [n]
    return cands


def _choose_head_group(num_heads, head_dim):
    """Smallest head-group G (dividing num_heads) with G*head_dim % 128 == 0
    (lane-dense stripes); falls back to all heads (full-E stripe, always legal)."""
    for g in range(1, num_heads + 1):
        if num_heads % g == 0 and (g * head_dim) % 128 == 0:
            return g
    return num_heads


# ----------------------------------------------------------------------------
# Kernel 1: fused QKV projection.  q/k/v = x @ W*_t + b*   (W*_t is (E, E))
# x is streamed from HBM once; biases are f32 and added to the f32 accumulator.
# ----------------------------------------------------------------------------
def _qkv_proj_kernel(x_ref, wq_ref, wk_ref, wv_ref, bq_ref, bk_ref, bv_ref,
                     q_ref, k_ref, v_ref):
    x = x_ref[...]
    for w_ref, b_ref, o_ref in ((wq_ref, bq_ref, q_ref),
                                (wk_ref, bk_ref, k_ref),
                                (wv_ref, bv_ref, v_ref)):
        acc = jnp.dot(x, w_ref[...], preferred_element_type=jnp.float32)
        o_ref[...] = (acc + b_ref[...]).astype(o_ref.dtype)


def _linear_kernel(x_ref, w_ref, b_ref, o_ref):
    acc = jnp.dot(x_ref[...], w_ref[...], preferred_element_type=jnp.float32)
    o_ref[...] = (acc + b_ref[...]).astype(o_ref.dtype)


def _pick_linear_tiles(M, K, N, itemsize, n_mats):
    tm_cands = _tile_candidates(M, 1024, 8)     # big M tile => weights streamed fewer times
    tn_cands = _tile_candidates(N, 512, 128)
    for tm in tm_cands:
        for tn in tn_cands:
            nbytes = 2 * itemsize * (tm * K + n_mats * (K * tn + tm * tn))
            nbytes += 2 * 4 * n_mats * tn       # f32 biases
            if nbytes <= _TILE_VMEM_BUDGET:
                return tm, tn
    return tm_cands[-1], tn_cands[-1]


def qkv_projection(x2, p):
    M, K = x2.shape
    E = p["q_w_t"].shape[1]
    itemsize = jnp.dtype(x2.dtype).itemsize
    tm, tn = _pick_linear_tiles(M, K, E, itemsize, n_mats=3)
    w_spec = pl.BlockSpec((K, tn), lambda i, j: (0, j))
    b_spec = pl.BlockSpec((1, tn), lambda i, j: (0, j))
    o_spec = pl.BlockSpec((tm, tn), lambda i, j: (i, j))
    q2, k2, v2 = pl.pallas_call(
        _qkv_proj_kernel,
        out_shape=tuple(jax.ShapeDtypeStruct((M, E), x2.dtype) for _ in range(3)),
        grid=(M // tm, E // tn),
        in_specs=[pl.BlockSpec((tm, K), lambda i, j: (i, 0)),
                  w_spec, w_spec, w_spec, b_spec, b_spec, b_spec],
        out_specs=(o_spec, o_spec, o_spec),
        compiler_params=_compiler_params(("parallel", "parallel")),
    )(x2, p["q_w_t"], p["k_w_t"], p["v_w_t"],
      p["q_b"].reshape(1, E), p["k_b"].reshape(1, E), p["v_b"].reshape(1, E))
    return q2, k2, v2


def linear(x2, w_t, b):
    M, K = x2.shape
    N = w_t.shape[1]
    itemsize = jnp.dtype(x2.dtype).itemsize
    tm, tn = _pick_linear_tiles(M, K, N, itemsize, n_mats=1)
    return pl.pallas_call(
        _linear_kernel,
        out_shape=jax.ShapeDtypeStruct((M, N), x2.dtype),
        grid=(M // tm, N // tn),
        in_specs=[pl.BlockSpec((tm, K), lambda i, j: (i, 0)),
                  pl.BlockSpec((K, tn), lambda i, j: (0, j)),
                  pl.BlockSpec((1, tn), lambda i, j: (0, j))],
        out_specs=pl.BlockSpec((tm, tn), lambda i, j: (i, j)),
        compiler_params=_compiler_params(("parallel", "parallel")),
    )(x2, w_t, b.reshape(1, N))


# ----------------------------------------------------------------------------
# Kernel 2 (fast path): flash-style attention over G heads, tq queries, tk keys.
# Heads live in the column direction of (B, T, E) buffers (stripe width G*d).
# Scale is already folded into the Q projection; normalization happens after
# the PV matmul using the EUP reciprocal.
# ----------------------------------------------------------------------------
def _flash_attn_kernel(q_ref, k_ref, v_ref, o_ref, m_ref, l_ref, acc_ref, *,
                       heads_per_block, head_dim, approx_recip):
    G, d = heads_per_block, head_dim
    ki = pl.program_id(3)

    @pl.when(ki == 0)
    def _init():
        m_ref[...] = jnp.full(m_ref.shape, -jnp.inf, jnp.float32)
        l_ref[...] = jnp.zeros(l_ref.shape, jnp.float32)
        acc_ref[...] = jnp.zeros(acc_ref.shape, jnp.float32)

    q_blk = q_ref[...]          # (tq, G*d)
    k_blk = k_ref[...]          # (tk, G*d)
    v_blk = v_ref[...]          # (tk, G*d)

    for h in range(G):          # static unroll over heads in the group
        lo, hi = h * d, (h + 1) * d
        q_h = q_blk[:, lo:hi]
        k_h = k_blk[:, lo:hi]
        v_h = v_blk[:, lo:hi]
        s = jax.lax.dot_general(q_h, k_h, (((1,), (1,)), ((), ())),
                                preferred_element_type=jnp.float32)   # (tq, tk)
        m_prev = m_ref[h]                                             # (tq, 1)
        m_cur = jnp.maximum(m_prev, jnp.max(s, axis=-1, keepdims=True))
        alpha = jnp.exp(m_prev - m_cur)
        e = jnp.exp(s - m_cur)
        # TODO(synk): on v6e/v7x the exp could be done in bf16 for the bf16 path.
        l_ref[h] = alpha * l_ref[h] + jnp.sum(e, axis=-1, keepdims=True)
        pv = jnp.dot(e.astype(v_h.dtype), v_h, preferred_element_type=jnp.float32)
        acc_ref[h] = alpha * acc_ref[h] + pv
        m_ref[h] = m_cur

    @pl.when(ki == pl.num_programs(3) - 1)
    def _finalize():
        outs = []
        for h in range(G):
            inv_l = pl.reciprocal(l_ref[h], approx=approx_recip)
            outs.append(acc_ref[h] * inv_l)          # normalize AFTER PV matmul
        # Single lane-dense (tq, G*d) store into the merged output layout.
        o_ref[...] = jnp.concatenate(outs, axis=-1).astype(o_ref.dtype)


# ----------------------------------------------------------------------------
# Kernel 2b (debug path): exact softmax + attention-weights writeback.
# ----------------------------------------------------------------------------
def _attn_weights_kernel(q_ref, k_ref, v_ref, o_ref, w_ref, *,
                         heads_per_block, head_dim):
    G, d = heads_per_block, head_dim
    q_blk = q_ref[...]          # (tq, G*d)
    k_blk = k_ref[...]          # (S,  G*d)
    v_blk = v_ref[...]          # (S,  G*d)
    outs = []
    for h in range(G):
        lo, hi = h * d, (h + 1) * d
        q_h = q_blk[:, lo:hi]
        k_h = k_blk[:, lo:hi]
        v_h = v_blk[:, lo:hi]
        s = jax.lax.dot_general(q_h, k_h, (((1,), (1,)), ((), ())),
                                preferred_element_type=jnp.float32)   # (tq, S)
        s = s - jnp.max(s, axis=-1, keepdims=True)
        e = jnp.exp(s)
        p = e * pl.reciprocal(jnp.sum(e, axis=-1, keepdims=True), approx=False)
        w_ref[h] = p.astype(w_ref.dtype)
        outs.append(jnp.dot(p.astype(v_h.dtype), v_h,
                            preferred_element_type=jnp.float32))
    o_ref[...] = jnp.concatenate(outs, axis=-1).astype(o_ref.dtype)


# ----------------------------------------------------------------------------
# Attention wrapper with VMEM-aware tile selection.
# ----------------------------------------------------------------------------
def _pick_fast_tiles(T, S, G, d, itemsize):
    tq_cands = _tile_candidates(T, 256, 8)
    tk_cands = _tile_candidates(S, 512, 8)
    for tq in tq_cands:
        for tk in tk_cands:
            blocks = 2 * itemsize * (2 * tq * G * d + 2 * tk * G * d)   # q,o + k,v
            scratch = 4 * G * tq * (d + 2 * 128)                        # acc + padded m,l
            temps = 4 * 4 * tq * tk                                     # s/e f32 temporaries
            if blocks + scratch + temps <= _TILE_VMEM_BUDGET:
                return tq, tk
    return tq_cands[-1], tk_cands[-1]


def _pick_weights_tq(T, S, G, d, itemsize):
    cands = _tile_candidates(T, 256, 8)
    for tq in cands:
        blocks = 2 * itemsize * (2 * tq * G * d + 2 * S * G * d + G * tq * S)
        temps = 4 * 4 * tq * S
        if blocks + temps <= _TILE_VMEM_BUDGET:
            return tq
    return cands[-1]


def attention(q3, k3, v3, num_heads, *, output_attentions=False,
              approx_recip=True):
    """q3/k3/v3: (B, T, E) with heads along the last axis (head j -> cols j*d:(j+1)*d).
    Returns (context (B,T,E) in merged-head layout, weights (B,H,T,S) or None)."""
    B, T, E = q3.shape
    S = k3.shape[1]
    H = num_heads
    d = E // H
    dtype = q3.dtype
    itemsize = jnp.dtype(dtype).itemsize
    G = _choose_head_group(H, d)
    Wg = G * d

    if output_attentions:
        tq = _pick_weights_tq(T, S, G, d, itemsize)
        kernel = functools.partial(_attn_weights_kernel,
                                   heads_per_block=G, head_dim=d)
        ctx, w = pl.pallas_call(
            kernel,
            out_shape=(jax.ShapeDtypeStruct((B, T, E), dtype),
                       jax.ShapeDtypeStruct((B, H, T, S), dtype)),
            grid=(B, H // G, T // tq),
            in_specs=[
                pl.BlockSpec((None, tq, Wg), lambda b, g, qi: (b, qi, g)),
                pl.BlockSpec((None, S, Wg), lambda b, g, qi: (b, 0, g)),
                pl.BlockSpec((None, S, Wg), lambda b, g, qi: (b, 0, g)),
            ],
            out_specs=(
                pl.BlockSpec((None, tq, Wg), lambda b, g, qi: (b, qi, g)),
                pl.BlockSpec((None, G, tq, S), lambda b, g, qi: (b, g, qi, 0)),
            ),
            compiler_params=_compiler_params(("parallel", "parallel", "parallel")),
        )(q3, k3, v3)
        return ctx, w

    tq, tk = _pick_fast_tiles(T, S, G, d, itemsize)
    kernel = functools.partial(_flash_attn_kernel, heads_per_block=G,
                               head_dim=d, approx_recip=approx_recip)
    ctx = pl.pallas_call(
        kernel,
        out_shape=jax.ShapeDtypeStruct((B, T, E), dtype),
        grid=(B, H // G, T // tq, S // tk),
        in_specs=[
            pl.BlockSpec((None, tq, Wg), lambda b, g, qi, ki: (b, qi, g)),
            pl.BlockSpec((None, tk, Wg), lambda b, g, qi, ki: (b, ki, g)),
            pl.BlockSpec((None, tk, Wg), lambda b, g, qi, ki: (b, ki, g)),
        ],
        out_specs=pl.BlockSpec((None, tq, Wg), lambda b, g, qi, ki: (b, qi, g)),
        scratch_shapes=[
            pltpu.VMEM((G, tq, 1), jnp.float32),   # m (running max)
            pltpu.VMEM((G, tq, 1), jnp.float32),   # l (running denom)
            pltpu.VMEM((G, tq, d), jnp.float32),   # acc (unnormalized output)
        ],
        compiler_params=_compiler_params(
            ("parallel", "parallel", "parallel", "arbitrary")),
    )(q3, k3, v3)
    return ctx, None


# ----------------------------------------------------------------------------
# Parameter preparation (done once).  Scale is folded into q_w / q_b in f32;
# weights are transposed to (in, out); biases stay f32 (added to f32 accums).
# ----------------------------------------------------------------------------
def prepare_params(params, num_heads, dtype=None):
    E = params["q_w"].shape[0]
    head_dim = E // num_heads
    scale = float(head_dim) ** -0.5

    def _w(mat):
        mat_t = mat.T
        return mat_t.astype(dtype) if dtype is not None else mat_t

    return {
        "q_w_t": _w(params["q_w"] * scale),
        "k_w_t": _w(params["k_w"]),
        "v_w_t": _w(params["v_w"]),
        "o_w_t": _w(params["o_w"]),
        "q_b": (params["q_b"] * scale).astype(jnp.float32),
        "k_b": params["k_b"].astype(jnp.float32),
        "v_b": params["v_b"].astype(jnp.float32),
        "o_b": params["o_b"].astype(jnp.float32),
    }


# ----------------------------------------------------------------------------
# Full BartAttention forward (self-attention, eval mode so dropout is identity).
# Returns (attn_output, attn_weights_or_None, past_key_value_or_None).
# ----------------------------------------------------------------------------
def bart_attention(hidden_states, prepared, num_heads, output_attentions=False,
                   approx_softmax_recip=True):
    # TODO(synk): cross-attention (key_value_states), past_key_value cache,
    # attention_mask and layer_head_mask branches are not implemented here.
    B, T, E = hidden_states.shape
    x2 = hidden_states.reshape(B * T, E)

    # Fused QKV projection (x read from HBM once; scale pre-folded into Q).
    q2, k2, v2 = qkv_projection(x2, prepared)

    # Leading-dim reshapes are free; heads stay in the column direction, so the
    # attention kernel indexes them via BlockSpec column stripes — no HBM
    # head-split / head-merge relayouts around the attention kernel.
    q3 = q2.reshape(B, T, E)
    k3 = k2.reshape(B, T, E)
    v3 = v2.reshape(B, T, E)

    ctx, attn_w = attention(q3, k3, v3, num_heads,
                            output_attentions=output_attentions,
                            approx_recip=approx_softmax_recip)

    out = linear(ctx.reshape(B * T, E), prepared["o_w_t"],
                 prepared["o_b"]).reshape(B, T, E)
    # past_key_value would be (key_states, value_states) when is_decoder=True.
    return out, attn_w, None


# ----------------------------------------------------------------------------
# Pure-JAX reference for correctness checking.
# ----------------------------------------------------------------------------
def bart_attention_ref(hidden_states, params, num_heads):
    B, T, E = hidden_states.shape
    d = E // num_heads
    scale = float(d) ** -0.5
    x = hidden_states
    q = (x @ params["q_w"].T + params["q_b"]) * scale
    k = x @ params["k_w"].T + params["k_b"]
    v = x @ params["v_w"].T + params["v_b"]

    def _shape(t):
        return t.reshape(B, T, num_heads, d).transpose(0, 2, 1, 3)

    qh, kh, vh = _shape(q), _shape(k), _shape(v)
    s = jnp.einsum("bhtd,bhsd->bhts", qh, kh)
    p = jax.nn.softmax(s, axis=-1)
    o = jnp.einsum("bhts,bhsd->bhtd", p, vh)
    o = o.transpose(0, 2, 1, 3).reshape(B, T, E)
    return o @ params["o_w"].T + params["o_b"], p


if __name__ == "__main__":
    B, T, E, H = 2, 8, 32, 4  # batch, seq, embed_dim, num_heads (head_dim = 8)

    key = jax.random.PRNGKey(0)
    keys = jax.random.split(key, 9)
    init = lambda kk, shape: (jax.random.normal(kk, shape, jnp.float32) * 0.05)

    params = {
        "q_w": init(keys[0], (E, E)), "q_b": init(keys[1], (E,)),
        "k_w": init(keys[2], (E, E)), "k_b": init(keys[3], (E,)),
        "v_w": init(keys[4], (E, E)), "v_b": init(keys[5], (E,)),
        "o_w": init(keys[6], (E, E)), "o_b": init(keys[7], (E,)),
    }
    hidden_states = jax.random.normal(keys[8], (B, T, E), jnp.float32)

    ref_out, ref_w = bart_attention_ref(hidden_states, params, H)

    prepared = prepare_params(params, H)

    # 1) fp32, output_attentions=True (exact softmax reciprocal) — tight check.
    out, attn_w, _ = bart_attention(hidden_states, prepared, H,
                                    output_attentions=True)
    out = jax.block_until_ready(out)
    attn_w = jax.block_until_ready(attn_w)
    assert out.shape == (B, T, E)
    assert attn_w.shape == (B, H, T, T)
    assert jnp.allclose(out, ref_out, atol=1e-4, rtol=1e-4)
    assert jnp.allclose(attn_w, ref_w, atol=1e-4, rtol=1e-4)

    # 2) fp32 fast path: flash-style S tiling, approx EUP reciprocal.
    out_fast, w_none, _ = bart_attention(hidden_states, prepared, H,
                                         output_attentions=False)
    out_fast = jax.block_until_ready(out_fast)
    assert w_none is None
    assert jnp.allclose(out_fast, ref_out, atol=3e-3, rtol=3e-3)

    # 3) bf16 path (MXU-native weights/activations, f32 accumulation + f32 bias).
    prepared_bf16 = prepare_params(params, H, dtype=jnp.bfloat16)
    out_bf16, _, _ = bart_attention(hidden_states.astype(jnp.bfloat16),
                                    prepared_bf16, H, output_attentions=False)
    out_bf16 = jax.block_until_ready(out_bf16)
    assert out_bf16.dtype == jnp.bfloat16
    assert jnp.allclose(out_bf16.astype(jnp.float32), ref_out,
                        atol=5e-2, rtol=5e-2)

    print("KERNEL_OK")
</pallas_src>

<mosaic_0001>
module attributes {stable_mosaic.version = 11 : i64} {
  func.func @_qkv_proj_kernel(%arg0: i32, %arg1: i32, %arg2: memref<16x32xf32, #tpu.memory_space<vmem>>, %arg3: memref<32x32xf32, #tpu.memory_space<vmem>>, %arg4: memref<32x32xf32, #tpu.memory_space<vmem>>, %arg5: memref<32x32xf32, #tpu.memory_space<vmem>>, %arg6: memref<1x32xf32, #tpu.memory_space<vmem>>, %arg7: memref<1x32xf32, #tpu.memory_space<vmem>>, %arg8: memref<1x32xf32, #tpu.memory_space<vmem>>, %arg9: memref<16x32xf32, #tpu.memory_space<vmem>>, %arg10: memref<16x32xf32, #tpu.memory_space<vmem>>, %arg11: memref<16x32xf32, #tpu.memory_space<vmem>>) attributes {dimension_semantics = [#tpu.dimension_semantics<parallel>, #tpu.dimension_semantics<parallel>], iteration_bounds = array<i64: 1, 1>, scalar_prefetch = 0 : i64, scratch_operands = 0 : i64, tpu.core_type = #tpu.core_type<tc>, window_params = [{transform_indices = @transform_0, window_bounds = array<i64: 16, 32>}, {transform_indices = @transform_1, window_bounds = array<i64: 32, 32>}, {transform_indices = @transform_2, window_bounds = array<i64: 32, 32>}, {transform_indices = @transform_3, window_bounds = array<i64: 32, 32>}, {transform_indices = @transform_4, window_bounds = array<i64: 1, 32>}, {transform_indices = @transform_5, window_bounds = array<i64: 1, 32>}, {transform_indices = @transform_6, window_bounds = array<i64: 1, 32>}, {transform_indices = @transform_7, window_bounds = array<i64: 16, 32>}, {transform_indices = @transform_8, window_bounds = array<i64: 16, 32>}, {transform_indices = @transform_9, window_bounds = array<i64: 16, 32>}]} {
    %c0 = arith.constant 0 : index
    %c0_0 = arith.constant 0 : index
    %0 = vector.load %arg2[%c0, %c0_0] : memref<16x32xf32, #tpu.memory_space<vmem>>, vector<16x32xf32>
    %c0_1 = arith.constant 0 : index
    %c0_2 = arith.constant 0 : index
    %1 = vector.load %arg3[%c0_1, %c0_2] : memref<32x32xf32, #tpu.memory_space<vmem>>, vector<32x32xf32>
    %cst = arith.constant dense<0.000000e+00> : vector<16x32xf32>
    %2 = tpu.matmul %0, %1, %cst {dimension_numbers = #tpu.dot_dimension_numbers<[1], [0], [0], [1], [0, 0, 1, 1], [], []>} : vector<16x32xf32>, vector<32x32xf32>, vector<16x32xf32> -> vector<16x32xf32>
    %c0_3 = arith.constant 0 : index
    %c0_4 = arith.constant 0 : index
    %3 = vector.load %arg6[%c0_3, %c0_4] : memref<1x32xf32, #tpu.memory_space<vmem>>, vector<1x32xf32>
    %4 = vector.broadcast %3 : vector<1x32xf32> to vector<16x32xf32>
    %5 = arith.addf %2, %4 : vector<16x32xf32>
    %c0_5 = arith.constant 0 : index
    %c0_6 = arith.constant 0 : index
    %6 = vector.load %arg9[%c0_5, %c0_6] : memref<16x32xf32, #tpu.memory_space<vmem>>, vector<16x32xf32>
    tpu.vector_store %arg9[%c0_5, %c0_6], %5 {strides = array<i32>} : memref<16x32xf32, #tpu.memory_space<vmem>>, vector<16x32xf32>,
    %c0_7 = arith.constant 0 : index
    %c0_8 = arith.constant 0 : index
    %7 = vector.load %arg4[%c0_7, %c0_8] : memref<32x32xf32, #tpu.memory_space<vmem>>, vector<32x32xf32>
    %cst_9 = arith.constant dense<0.000000e+00> : vector<16x32xf32>
    %8 = tpu.matmul %0, %7, %cst_9 {dimension_numbers = #tpu.dot_dimension_numbers<[1], [0], [0], [1], [0, 0, 1, 1], [], []>} : vector<16x32xf32>, vector<32x32xf32>, vector<16x32xf32> -> vector<16x32xf32>
    %c0_10 = arith.constant 0 : index
    %c0_11 = arith.constant 0 : index
    %9 = vector.load %arg7[%c0_10, %c0_11] : memref<1x32xf32, #tpu.memory_space<vmem>>, vector<1x32xf32>
    %10 = vector.broadcast %9 : vector<1x32xf32> to vector<16x32xf32>
    %11 = arith.addf %8, %10 : vector<16x32xf32>
    %c0_12 = arith.constant 0 : index
    %c0_13 = arith.constant 0 : index
    %12 = vector.load %arg10[%c0_12, %c0_13] : memref<16x32xf32, #tpu.memory_space<vmem>>, vector<16x32xf32>
    tpu.vector_store %arg10[%c0_12, %c0_13], %11 {strides = array<i32>} : memref<16x32xf32, #tpu.memory_space<vmem>>, vector<16x32xf32>,
    %c0_14 = arith.constant 0 : index
    %c0_15 = arith.constant 0 : index
    %13 = vector.load %arg5[%c0_14, %c0_15] : memref<32x32xf32, #tpu.memory_space<vmem>>, vector<32x32xf32>
    %cst_16 = arith.constant dense<0.000000e+00> : vector<16x32xf32>
    %14 = tpu.matmul %0, %13, %cst_16 {dimension_numbers = #tpu.dot_dimension_numbers<[1], [0], [0], [1], [0, 0, 1, 1], [], []>} : vector<16x32xf32>, vector<32x32xf32>, vector<16x32xf32> -> vector<16x32xf32>
    %c0_17 = arith.constant 0 : index
    %c0_18 = arith.constant 0 : index
    %15 = vector.load %arg8[%c0_17, %c0_18] : memref<1x32xf32, #tpu.memory_space<vmem>>, vector<1x32xf32>
    %16 = vector.broadcast %15 : vector<1x32xf32> to vector<16x32xf32>
    %17 = arith.addf %14, %16 : vector<16x32xf32>
    %c0_19 = arith.constant 0 : index
    %c0_20 = arith.constant 0 : index
    %18 = vector.load %arg11[%c0_19, %c0_20] : memref<16x32xf32, #tpu.memory_space<vmem>>, vector<16x32xf32>
    tpu.vector_store %arg11[%c0_19, %c0_20], %17 {strides = array<i32>} : memref<16x32xf32, #tpu.memory_space<vmem>>, vector<16x32xf32>,
    return
  }
  func.func @transform_0(%arg0: i32, %arg1: i32) -> (i32, i32) {
    %c0_i32 = arith.constant 0 : i32
    %c0_i32_0 = arith.constant 0 : i32
    return %arg0, %c0_i32 : i32, i32
  }
  func.func @transform_1(%arg0: i32, %arg1: i32) -> (i32, i32) {
    %c0_i32 = arith.constant 0 : i32
    %c0_i32_0 = arith.constant 0 : i32
    return %c0_i32, %arg1 : i32, i32
  }
  func.func @transform_2(%arg0: i32, %arg1: i32) -> (i32, i32) {
    %c0_i32 = arith.constant 0 : i32
    %c0_i32_0 = arith.constant 0 : i32
    return %c0_i32, %arg1 : i32, i32
  }
  func.func @transform_3(%arg0: i32, %arg1: i32) -> (i32, i32) {
    %c0_i32 = arith.constant 0 : i32
    %c0_i32_0 = arith.constant 0 : i32
    return %c0_i32, %arg1 : i32, i32
  }
  func.func @transform_4(%arg0: i32, %arg1: i32) -> (i32, i32) {
    %c0_i32 = arith.constant 0 : i32
    %c0_i32_0 = arith.constant 0 : i32
    return %c0_i32, %arg1 : i32, i32
  }
  func.func @transform_5(%arg0: i32, %arg1: i32) -> (i32, i32) {
    %c0_i32 = arith.constant 0 : i32
    %c0_i32_0 = arith.constant 0 : i32
    return %c0_i32, %arg1 : i32, i32
  }
  func.func @transform_6(%arg0: i32, %arg1: i32) -> (i32, i32) {
    %c0_i32 = arith.constant 0 : i32
    %c0_i32_0 = arith.constant 0 : i32
    return %c0_i32, %arg1 : i32, i32
  }
  func.func @transform_7(%arg0: i32, %arg1: i32) -> (i32, i32) {
    %c0_i32 = arith.constant 0 : i32
    return %arg0, %arg1 : i32, i32
  }
  func.func @transform_8(%arg0: i32, %arg1: i32) -> (i32, i32) {
    %c0_i32 = arith.constant 0 : i32
    return %arg0, %arg1 : i32, i32
  }
  func.func @transform_9(%arg0: i32, %arg1: i32) -> (i32, i32) {
    %c0_i32 = arith.constant 0 : i32
    return %arg0, %arg1 : i32, i32
  }
}

</mosaic_0001>

<llo_original>
// kernel: tpu_custom_call.1
$region0: #{tpu_custom_call.1}
  #allocation0 [shape = 'u32[]', space=smem, size = 0x4, offset = 0x4, fixed_abs, tag = 'smem constant byte address 0x4 - core index']
  #allocation1 [shape = 'u32[72,128]{1,0:T(1,128)}', space=vmem, size = 0x9000, scoped, tag = 'internal scratch']
  %s0 = inlined_call_operand.hbm [shape: f32[16,32], index: 0, kind: input, shape index: {}]
  %s1 = inlined_call_operand.hbm [shape: f32[32,32], index: 1, kind: input, shape index: {}]
  %s2 = inlined_call_operand.hbm [shape: f32[32,32], index: 2, kind: input, shape index: {}]
  %s3 = inlined_call_operand.hbm [shape: f32[32,32], index: 3, kind: input, shape index: {}]
  %s4 = inlined_call_operand.vmem [shape: f32[1,32], index: 4, kind: input, shape index: {}]
  %s5 = inlined_call_operand.vmem [shape: f32[1,32], index: 5, kind: input, shape index: {}]
  %s6 = inlined_call_operand.vmem [shape: f32[1,32], index: 6, kind: input, shape index: {}]
  %s7 = inlined_call_operand.hbm [shape: f32[16,32], index: 7, kind: output, shape index: {0}]
  %s8 = inlined_call_operand.hbm [shape: f32[16,32], index: 8, kind: output, shape index: {1}]
  %s9 = inlined_call_operand.hbm [shape: f32[16,32], index: 9, kind: output, shape index: {2}]
  %10 = xla_tuple %s7, %s8, %s9
  %s11 = sld [smem:[#allocation0]]
  $region70: #{tpu_custom_call.1} parent=0
    _
  %s13 = ssub.s32 1, %s11
  %s14 = scalar_select 0, %s13, %s11
  $region1: #{tpu_custom_call.1} parent=0
    #allocation2 [shape = 'u8[8192]{0}', space=vmem, size = 0x2000, scoped, tag = 'input window, operand 0, single buffered']
    #allocation3 [shape = 's32[1]{0}', space=sflag, size = 0x4, scoped, tag = 'scoped memory for tpu_custom_call.1']
    #allocation4 [shape = 's32[1]{0}', space=sflag, size = 0x4, scoped, tag = 'scoped memory for tpu_custom_call.1']
    #allocation5 [shape = 'u8[16384]{0}', space=vmem, size = 0x4000, scoped, tag = 'input window, operand 1, single buffered']
    #allocation6 [shape = 's32[1]{0}', space=sflag, size = 0x4, scoped, tag = 'scoped memory for tpu_custom_call.1']
    #allocation7 [shape = 'u8[16384]{0}', space=vmem, size = 0x4000, scoped, tag = 'input window, operand 2, single buffered']
    #allocation8 [shape = 'u8[16384]{0}', space=vmem, size = 0x4000, scoped, tag = 'input window, operand 3, single buffered']
    #allocation9 [shape = 's32[1]{0}', space=sflag, size = 0x4, scoped, tag = 'scoped memory for tpu_custom_call.1']
    #allocation10 [shape = 'u8[8192]{0}', space=vmem, size = 0x2000, scoped, tag = 'output window, operand 0, single buffered']
    #allocation11 [shape = 'u8[8192]{0}', space=vmem, size = 0x2000, scoped, tag = 'output window, operand 1, single buffered']
    #allocation12 [shape = 's32[1]{0}', space=sflag, size = 0x4, scoped, tag = 'scoped memory for tpu_custom_call.1']
    #allocation13 [shape = 'u8[8192]{0}', space=vmem, size = 0x2000, scoped, tag = 'output window, operand 2, single buffered']
    %15 = vsyncpa [#allocation3], 0
    %16 = vsyncpa [#allocation6], 0
    %17 = vsyncpa [#allocation9], 0
    %18 = vsyncpa [#allocation4], 0
    %19 = vsyncpa [#allocation12], 0
    // Predicated region
    $region2: #{tpu_custom_call.1} parent=1 // pred_check
      _
    $region3: #{tpu_custom_call.1} parent=1 // pred_check_branch
      %21 = sbr.rel (0) target = $region5
    $region4: #{tpu_custom_call.1} parent=1 // pred_region
      %23 = vsyncadd [#allocation3], 0
      %s24 = sshll.u32 %s0, 4
      %s25 = int_to_ptr.hbm [resolvable:$true] %s24
      %s26 = sshll.u32 [#allocation2], 4
      %s27 = int_to_ptr.vmem [resolvable:$true] %s26
      %32 = dma.hbm_to_vmem [thread:$0]  %s25, 256, %s27, [#allocation3], 128, 128, 8
    $region5: #{tpu_custom_call.1} parent=1 // pred_fallthru
      _
    // Predicated region
    $region6: #{tpu_custom_call.1} parent=1 // pred_check
      _
    $region7: #{tpu_custom_call.1} parent=1 // pred_check_branch
      %34 = sbr.rel (0) target = $region9
    $region8: #{tpu_custom_call.1} parent=1 // pred_region
      %36 = vsyncadd [#allocation6], 0
      %s37 = sshll.u32 %s1, 4
      %s38 = int_to_ptr.hbm [resolvable:$true] %s37
      %s39 = sshll.u32 [#allocation5], 4
      %s40 = int_to_ptr.vmem [resolvable:$true] %s39
      %45 = dma.hbm_to_vmem [thread:$0]  %s38, 512, %s40, [#allocation6], 128, 128, 8
    $region9: #{tpu_custom_call.1} parent=1 // pred_fallthru
      _
    // Predicated region
    $region10: #{tpu_custom_call.1} parent=1 // pred_check
      _
    $region11: #{tpu_custom_call.1} parent=1 // pred_check_branch
      %47 = sbr.rel (0) target = $region13
    $region12: #{tpu_custom_call.1} parent=1 // pred_region
      %49 = vsyncadd [#allocation6], 0
      %s50 = sshll.u32 %s2, 4
      %s51 = int_to_ptr.hbm [resolvable:$true] %s50
      %s52 = sshll.u32 [#allocation7], 4
      %s53 = int_to_ptr.vmem [resolvable:$true] %s52
      %58 = dma.hbm_to_vmem [thread:$0]  %s51, 512, %s53, [#allocation6], 128, 128, 8
    $region13: #{tpu_custom_call.1} parent=1 // pred_fallthru
      _
    // Predicated region
    $region14: #{tpu_custom_call.1} parent=1 // pred_check
      _
    $region15: #{tpu_custom_call.1} parent=1 // pred_check_branch
      %60 = sbr.rel (0) target = $region17
    $region16: #{tpu_custom_call.1} parent=1 // pred_region
      %62 = vsyncadd [#allocation9], 0
      %s63 = sshll.u32 %s3, 4
      %s64 = int_to_ptr.hbm [resolvable:$true] %s63
      %s65 = sshll.u32 [#allocation8], 4
      %s66 = int_to_ptr.vmem [resolvable:$true] %s65
      %71 = dma.hbm_to_vmem [thread:$0]  %s64, 512, %s66, [#allocation9], 128, 128, 8
    $region17: #{tpu_custom_call.1} parent=1 // pred_fallthru
      _
    // Predicated region
    $region18: #{tpu_custom_call.1} parent=1 // pred_check
      _
    $region19: #{tpu_custom_call.1} parent=1 // pred_check_branch
      %73 = sbr.rel (0) target = $region21
    $region20: #{tpu_custom_call.1} parent=1 // pred_region
      _
    $region21: #{tpu_custom_call.1} parent=1 // pred_fallthru
      _
    // Predicated region
    $region22: #{tpu_custom_call.1} parent=1 // pred_check
      _
    $region23: #{tpu_custom_call.1} parent=1 // pred_check_branch
      %75 = sbr.rel (0) target = $region25
    $region24: #{tpu_custom_call.1} parent=1 // pred_region
      _
    $region25: #{tpu_custom_call.1} parent=1 // pred_fallthru
      _
    // Predicated region
    $region26: #{tpu_custom_call.1} parent=1 // pred_check
      _
    $region27: #{tpu_custom_call.1} parent=1 // pred_check_branch
      %77 = sbr.rel (0) target = $region29
    $region28: #{tpu_custom_call.1} parent=1 // pred_region
      _
    $region29: #{tpu_custom_call.1} parent=1 // pred_fallthru
      _
    // Predicated region
    $region30: #{tpu_custom_call.1} parent=1 // pred_check
      _
    $region31: #{tpu_custom_call.1} parent=1 // pred_check_branch
      %79 = sbr.rel (0) target = $region33
    $region32: #{tpu_custom_call.1} parent=1 // pred_region
      %81 = dma.done [#allocation3], 256
    $region33: #{tpu_custom_call.1} parent=1 // pred_fallthru
      _
    // Predicated region
    $region34: #{tpu_custom_call.1} parent=1 // pred_check
      _
    $region35: #{tpu_custom_call.1} parent=1 // pred_check_branch
      %83 = sbr.rel (0) target = $region37
    $region36: #{tpu_custom_call.1} parent=1 // pred_region
      %85 = dma.done [#allocation6], 512
    $region37: #{tpu_custom_call.1} parent=1 // pred_fallthru
      _
    // Predicated region
    $region38: #{tpu_custom_call.1} parent=1 // pred_check
      _
    $region39: #{tpu_custom_call.1} parent=1 // pred_check_branch
      %87 = sbr.rel (0) target = $region41
    $region40: #{tpu_custom_call.1} parent=1 // pred_region
      %89 = dma.done [#allocation6], 512
    $region41: #{tpu_custom_call.1} parent=1 // pred_fallthru
      _
    // Predicated region
    $region42: #{tpu_custom_call.1} parent=1 // pred_check
      _
    $region43: #{tpu_custom_call.1} parent=1 // pred_check_branch
      %91 = sbr.rel (0) target = $region45
    $region44: #{tpu_custom_call.1} parent=1 // pred_region
      %93 = dma.done [#allocation9], 512
    $region45: #{tpu_custom_call.1} parent=1 // pred_fallthru
      _
    %v94 = vld [vmem:[#allocation2] sm:$0xff]
    %v95 = vld [vmem:[#allocation2 + $0x8] sm:$0xff]
    %v96 = vld [vmem:[#allocation5] sm:$0xff]
    %v97 = vld [vmem:[#allocation5 + $0x8] sm:$0xff]
    %v98 = vld [vmem:[#allocation5 + $0x10] sm:$0xff]
    %v99 = vld [vmem:[#allocation5 + $0x18] sm:$0xff]
    %v100 = vld [vmem:[%s4] sm:$0x1]
    %v102 = vperm.slane %v100, 0
    %vm104 = vcmask 261120
    %v106 = vsel %vm104, %v94, 0
    %v109 = vsel %vm104, %v95, 0
    %111 = vmatpush.msra.mxu0 0.0
    %112 = vmatpush.msra.mxu0 0.0
    %113 = vmatpush.msra.mxu0 0.0
    %114 = vmatpush.msra.mxu0 0.0
    %115 = vmatpush.msra.mxu0 0.0
    %116 = vmatpush.msra.mxu0 0.0
    %117 = vmatpush.msra.mxu0 0.0
    %118 = vmatpush.msra.mxu0 0.0
    %119 = vmatpush.msra.mxu0 0.0
    %120 = vmatpush.msra.mxu0 0.0
    %121 = vmatpush.msra.mxu0 0.0
    %122 = vmatpush.msra.mxu0 0.0
    %123 = vmatpush.msra.mxu0 %v99
    %124 = vmatpush.msra.mxu0 %v98
    %125 = vmatpush.msra.mxu0 %v97
    %126 = vmatpush.msra.mxu0 %v96
    %127 = vmatmul.f32.gmra.mxu0 %v106
    %v128 = vpop.f32.mrf.mxu0
    %v129 = vadd.f32 %v102, %v128
    %130 = vmatmul.f32.gmra.mxu0 %v109
    %v131 = vpop.f32.mrf.mxu0
    %v132 = vadd.f32 %v102, %v131
    %133 = vdwg.mxu0
    %134 = vst.msk [vmem:[#allocation10] sm:$0xff] %vm104, %v129
    %135 = vst.msk [vmem:[#allocation10 + $0x8] sm:$0xff] %vm104, %v132
    %v136 = vld [vmem:[#allocation7] sm:$0xff]
    %v137 = vld [vmem:[#allocation7 + $0x8] sm:$0xff]
    %v138 = vld [vmem:[#allocation7 + $0x10] sm:$0xff]
    %v139 = vld [vmem:[#allocation7 + $0x18] sm:$0xff]
    %v140 = vld [vmem:[%s5] sm:$0x1]
    %v142 = vperm.slane %v140, 0
    %144 = vmatpush.msra.mxu0 0.0
    %145 = vmatpush.msra.mxu0 0.0
    %146 = vmatpush.msra.mxu0 0.0
    %147 = vmatpush.msra.mxu0 0.0
    %148 = vmatpush.msra.mxu0 0.0
    %149 = vmatpush.msra.mxu0 0.0
    %150 = vmatpush.msra.mxu0 0.0
    %151 = vmatpush.msra.mxu0 0.0
    %152 = vmatpush.msra.mxu0 0.0
    %153 = vmatpush.msra.mxu0 0.0
    %154 = vmatpush.msra.mxu0 0.0
    %155 = vmatpush.msra.mxu0 0.0
    %156 = vmatpush.msra.mxu0 %v139
    %157 = vmatpush.msra.mxu0 %v138
    %158 = vmatpush.msra.mxu0 %v137
    %159 = vmatpush.msra.mxu0 %v136
    %160 = vmatmul.f32.gmra.mxu0 %v106
    %v161 = vpop.f32.mrf.mxu0
    %v162 = vadd.f32 %v142, %v161
    %163 = vmatmul.f32.gmra.mxu0 %v109
    %v164 = vpop.f32.mrf.mxu0
    %v165 = vadd.f32 %v142, %v164
    %166 = vdwg.mxu0
    %167 = vst.msk [vmem:[#allocation11] sm:$0xff] %vm104, %v162
    %168 = vst.msk [vmem:[#allocation11 + $0x8] sm:$0xff] %vm104, %v165
    %v169 = vld [vmem:[#allocation8] sm:$0xff]
    %v170 = vld [vmem:[#allocation8 + $0x8] sm:$0xff]
    %v171 = vld [vmem:[#allocation8 + $0x10] sm:$0xff]
    %v172 = vld [vmem:[#allocation8 + $0x18] sm:$0xff]
    %v173 = vld [vmem:[%s6] sm:$0x1]
    %v175 = vperm.slane %v173, 0
    %177 = vmatpush.msra.mxu0 0.0
    %178 = vmatpush.msra.mxu0 0.0
    %179 = vmatpush.msra.mxu0 0.0
    %180 = vmatpush.msra.mxu0 0.0
    %181 = vmatpush.msra.mxu0 0.0
    %182 = vmatpush.msra.mxu0 0.0
    %183 = vmatpush.msra.mxu0 0.0
    %184 = vmatpush.msra.mxu0 0.0
    %185 = vmatpush.msra.mxu0 0.0
    %186 = vmatpush.msra.mxu0 0.0
    %187 = vmatpush.msra.mxu0 0.0
    %188 = vmatpush.msra.mxu0 0.0
    %189 = vmatpush.msra.mxu0 %v172
    %190 = vmatpush.msra.mxu0 %v171
    %191 = vmatpush.msra.mxu0 %v170
    %192 = vmatpush.msra.mxu0 %v169
    %193 = vmatmul.f32.gmra.mxu0 %v106
    %v194 = vpop.f32.mrf.mxu0
    %v195 = vadd.f32 %v175, %v194
    %196 = vmatmul.f32.gmra.mxu0 %v109
    %v197 = vpop.f32.mrf.mxu0
    %v198 = vadd.f32 %v175, %v197
    %199 = vdwg.mxu0
    %200 = vst.msk [vmem:[#allocation13] sm:$0xff] %vm104, %v195
    %201 = vst.msk [vmem:[#allocation13 + $0x8] sm:$0xff] %vm104, %v198
    // Predicated region
    $region46: #{tpu_custom_call.1} parent=1 // pred_check
      _
    $region47: #{tpu_custom_call.1} parent=1 // pred_check_branch
      %203 = sbr.rel (0) target = $region49
    $region48: #{tpu_custom_call.1} parent=1 // pred_region
      %205 = vsyncadd [#allocation4], 0
      %s206 = sshll.u32 [#allocation10], 4
      %s207 = int_to_ptr.vmem [resolvable:$true] %s206
      %s208 = sshll.u32 %s7, 4
      %s209 = int_to_ptr.hbm [resolvable:$true] %s208
      %214 = dma.vmem_to_hbm [thread:$0]  %s207, 256, %s209, [#allocation4], 128, 128, 8
    $region49: #{tpu_custom_call.1} parent=1 // pred_fallthru
      _
    // Predicated region
    $region50: #{tpu_custom_call.1} parent=1 // pred_check
      _
    $region51: #{tpu_custom_call.1} parent=1 // pred_check_branch
      %216 = sbr.rel (0) target = $region53
    $region52: #{tpu_custom_call.1} parent=1 // pred_region
      %218 = vsyncadd [#allocation12], 0
      %s219 = sshll.u32 [#allocation11], 4
      %s220 = int_to_ptr.vmem [resolvable:$true] %s219
      %s221 = sshll.u32 %s8, 4
      %s222 = int_to_ptr.hbm [resolvable:$true] %s221
      %227 = dma.vmem_to_hbm [thread:$0]  %s220, 256, %s222, [#allocation12], 128, 128, 8
    $region53: #{tpu_custom_call.1} parent=1 // pred_fallthru
      _
    // Predicated region
    $region54: #{tpu_custom_call.1} parent=1 // pred_check
      _
    $region55: #{tpu_custom_call.1} parent=1 // pred_check_branch
      %229 = sbr.rel (0) target = $region57
    $region56: #{tpu_custom_call.1} parent=1 // pred_region
      %231 = vsyncadd [#allocation12], 0
      %s232 = sshll.u32 [#allocation13], 4
      %s233 = int_to_ptr.vmem [resolvable:$true] %s232
      %s234 = sshll.u32 %s9, 4
      %s235 = int_to_ptr.hbm [resolvable:$true] %s234
      %240 = dma.vmem_to_hbm [thread:$0]  %s233, 256, %s235, [#allocation12], 128, 128, 8
    $region57: #{tpu_custom_call.1} parent=1 // pred_fallthru
      _
    // Predicated region
    $region58: #{tpu_custom_call.1} parent=1 // pred_check
      _
    $region59: #{tpu_custom_call.1} parent=1 // pred_check_branch
      %242 = sbr.rel (0) target = $region61
    $region60: #{tpu_custom_call.1} parent=1 // pred_region
      %244 = dma.done [#allocation4], 256
    $region61: #{tpu_custom_call.1} parent=1 // pred_fallthru
      _
    // Predicated region
    $region62: #{tpu_custom_call.1} parent=1 // pred_check
      _
    $region63: #{tpu_custom_call.1} parent=1 // pred_check_branch
      %246 = sbr.rel (0) target = $region65
    $region64: #{tpu_custom_call.1} parent=1 // pred_region
      %248 = dma.done [#allocation12], 256
    $region65: #{tpu_custom_call.1} parent=1 // pred_fallthru
      _
    // Predicated region
    $region66: #{tpu_custom_call.1} parent=1 // pred_check
      _
    $region67: #{tpu_custom_call.1} parent=1 // pred_check_branch
      %250 = sbr.rel (0) target = $region69
    $region68: #{tpu_custom_call.1} parent=1 // pred_region
      %252 = dma.done [#allocation12], 256
    $region69: #{tpu_custom_call.1} parent=1 // pred_fallthru
      _
    %253 = vsyncpa [#allocation3], 1
    %254 = vsyncpa [#allocation6], 1
    %255 = vsyncpa [#allocation9], 1
    %256 = vsyncpa [#allocation4], 1
    %257 = vsyncpa [#allocation12], 1

</llo_original>
